<compile_context>
chip_gen: v7x
topology: tpu7x:2x2x1
jax: 0.10.0
libtpu: 0.0.40
codegen_flags: <defaults>
</compile_context>

<pallas_src>
import functools

import jax
import jax.numpy as jnp
from jax.experimental import pallas as pl
from jax.experimental.pallas import tpu as pltpu

GROUPS = 8
EPS = 1e-5
NEG_SLOPE = 0.01  # PyTorch LeakyReLU default negative_slope


# ---------------- Fused kernel: GroupNorm(8) + LeakyReLU + ConvTranspose2d ----------------
def _fused_gn_lrelu_convt_kernel(x_ref, gmat_ref, gam_ref, bet_ref, w_ref, b_ref,
                                 o_ref, *, shifts, nb):
    """Processes `nb` batch elements per grid step.

    x_ref : (nb, C, H*W)      activations (channels on sublanes, flat spatial on lanes)
    gmat  : (C, C)            group-averaging matrix (1/Cg inside a group, else 0)
    gam   : (C, 1), bet (C,1) GroupNorm affine parameters
    w_ref : (4*Cout, 4*C)     merged weight; row blocks = parity planes [ee,eo,oe,oo],
                              column blocks = shift {0, 1, W, W+1} taps (bf16)
    b_ref : (4*Cout, 1)       conv bias tiled over the 4 parity planes
    o_ref : (nb, 4*Cout, H*W) parity planes [ee, eo, oe, oo] stacked along rows
    """
    w_cat = w_ref[...]                                       # (4*Cout, 4*C) bf16
    gmat = gmat_ref[...]
    gam = gam_ref[...]
    bet = bet_ref[...]
    bias = b_ref[...]                                        # (4*Cout, 1) f32

    for n in range(nb):                                      # nb is small & static
        xf = x_ref[n].astype(jnp.float32)                    # (C, HW)
        hw = xf.shape[1]

        # ---- GroupNorm: single-pass stats, one (C,C)@(C,2) group-average matmul ----
        s1 = jnp.mean(xf, axis=1, keepdims=True)             # (C, 1) E[x] per channel
        s2 = jnp.mean(xf * xf, axis=1, keepdims=True)        # (C, 1) E[x^2] per channel
        g = jnp.dot(gmat, jnp.concatenate([s1, s2], axis=1),
                    preferred_element_type=jnp.float32)      # (C, 2) group E[x], E[x^2]
        gmean = g[:, 0:1]
        gvar = g[:, 1:2] - gmean * gmean                     # biased variance
        a_ln = jax.lax.rsqrt(gvar + EPS) * gam               # fused scale
        b_ln = bet - gmean * a_ln                            # fused shift
        y = xf * a_ln + b_ln
        y = jnp.maximum(y, NEG_SLOPE * y)                    # LeakyReLU(0.01), one vmax

        # ---- ConvTranspose2d(k=3, s=2, p=1): sub-pixel (parity) decomposition as ONE
        #      matmul over the concatenated shifted views (K = 4*C).  Lane-roll wraps
        #      land only in the cropped output row/column (2H-1, 2W-1 are discarded).
        views = [y] + [pltpu.roll(y, hw - s, axis=1) for s in shifts]   # == y[:, p+s]
        y4 = jnp.concatenate(views, axis=0).astype(jnp.bfloat16)        # (4*C, HW)
        acc = jnp.dot(w_cat, y4, preferred_element_type=jnp.float32)    # (4*Cout, HW)
        o_ref[n] = (acc + bias).astype(o_ref.dtype)


def transposed_conv_forward(x, params, *, images_per_step=1):
    """x: (N, Cin, H, W) NCHW.  Returns (N, Cout, 2H-1, 2W-1) NCHW."""
    N, C, H, W = x.shape
    assert C % GROUPS == 0
    assert N % images_per_step == 0
    NB = images_per_step
    gamma, beta = params["gn_gamma"], params["gn_beta"]
    wt, bias = params["tw"], params["tb"]                    # wt: (Cin, Cout, 3, 3)
    Cout = wt.shape[1]
    Ho, Wo = 2 * H - 1, 2 * W - 1
    HW = H * W
    Cg = C // GROUPS

    # Flatten spatial so the kernel sees lane-dense (C, H*W) activation blocks (free reshape).
    xf = x.reshape(N, C, HW)

    # Constant group-averaging matrix: gmat @ v gives per-channel group means.
    cidx = jnp.arange(C)
    gmat = ((cidx[:, None] // Cg) == (cidx[None, :] // Cg)).astype(jnp.float32) / Cg

    gam = gamma.reshape(C, 1).astype(jnp.float32)
    bet = beta.reshape(C, 1).astype(jnp.float32)

    # Merged weight for the single K=4*C matmul.
    # Row blocks = parity planes [ee, eo, oe, oo]; column blocks = shift {0, 1, W, W+1}.
    def tap(kh, kw):
        return wt[:, :, kh, kw].T.astype(jnp.float32)        # (Cout, Cin)

    z = jnp.zeros((Cout, C), jnp.float32)
    w_cat = jnp.concatenate([
        jnp.concatenate([tap(1, 1), z,         z,         z        ], axis=1),  # ee
        jnp.concatenate([tap(1, 2), tap(1, 0), z,         z        ], axis=1),  # eo
        jnp.concatenate([tap(2, 1), z,         tap(0, 1), z        ], axis=1),  # oe
        jnp.concatenate([tap(2, 2), tap(2, 0), tap(0, 2), tap(0, 0)], axis=1),  # oo
    ], axis=0).astype(jnp.bfloat16)                          # (4*Cout, 4*C), bf16 MXU operand
    b_t = jnp.tile(bias, 4).reshape(4 * Cout, 1).astype(jnp.float32)

    kernel = functools.partial(_fused_gn_lrelu_convt_kernel,
                               shifts=(1, W, W + 1), nb=NB)

    out = pl.pallas_call(
        kernel,
        out_shape=jax.ShapeDtypeStruct((N, 4 * Cout, HW), x.dtype),
        grid=(N // NB,),
        in_specs=[
            pl.BlockSpec((NB, C, HW), lambda g: (g, 0, 0)),
            pl.BlockSpec((C, C), lambda g: (0, 0)),
            pl.BlockSpec((C, 1), lambda g: (0, 0)),
            pl.BlockSpec((C, 1), lambda g: (0, 0)),
            pl.BlockSpec((4 * Cout, 4 * C), lambda g: (0, 0)),
            pl.BlockSpec((4 * Cout, 1), lambda g: (0, 0)),
        ],
        out_specs=pl.BlockSpec((NB, 4 * Cout, HW), lambda g: (g, 0, 0)),
        compiler_params=pltpu.CompilerParams(dimension_semantics=("parallel",)),
    )(xf, gmat, gam, bet, w_cat, b_t)

    # Interleave the 4 parity planes into NCHW (single XLA relayout pass).
    out = out.reshape(N, 2, 2, Cout, H, W)                   # [n, ph, pw, co, h, w]
    out = jnp.transpose(out, (0, 3, 4, 1, 5, 2))             # [n, co, h, ph, w, pw]
    out = out.reshape(N, Cout, 2 * H, 2 * W)[:, :, :Ho, :Wo]
    return out


# ---------------- Pure-JAX reference (for correctness check) ----------------
def reference_forward(x, params):
    N, C, H, W = x.shape
    xg = x.reshape(N, GROUPS, -1)
    mean = xg.mean(-1, keepdims=True)
    var = xg.var(-1, keepdims=True)
    xn = ((xg - mean) / jnp.sqrt(var + EPS)).reshape(N, C, H, W)
    y = xn * params["gn_gamma"].reshape(1, C, 1, 1) + params["gn_beta"].reshape(1, C, 1, 1)
    y = jnp.where(y >= 0, y, NEG_SLOPE * y)
    w_conv = jnp.transpose(jnp.flip(params["tw"], axis=(2, 3)), (2, 3, 0, 1))
    out = jax.lax.conv_general_dilated(
        jnp.transpose(y, (0, 2, 3, 1)), w_conv,
        window_strides=(1, 1), padding=((1, 1), (1, 1)), lhs_dilation=(2, 2),
        dimension_numbers=("NHWC", "HWIO", "NHWC"))
    out = out + params["tb"].reshape(1, 1, 1, -1)
    return jnp.transpose(out, (0, 3, 1, 2))


if __name__ == "__main__":
    key = jax.random.PRNGKey(0)
    k1, k2, k3, k4, k5 = jax.random.split(key, 5)
    N, Cin, Cout, H, W = 2, 16, 8, 16, 16   # Cin must be divisible by 8 (GroupNorm groups)

    x = jax.random.normal(k1, (N, Cin, H, W), jnp.float32)
    params = {
        "gn_gamma": 1.0 + 0.1 * jax.random.normal(k2, (Cin,), jnp.float32),
        "gn_beta": 0.1 * jax.random.normal(k3, (Cin,), jnp.float32),
        "tw": 0.1 * jax.random.normal(k4, (Cin, Cout, 3, 3), jnp.float32),
        "tb": 0.1 * jax.random.normal(k5, (Cout,), jnp.float32),
    }

    ref = reference_forward(x, params)

    # Default: one image per grid step (grid=(N,), "parallel" -> both v7x TCs busy for N>=2).
    out = jax.block_until_ready(jax.jit(transposed_conv_forward)(x, params))
    assert out.shape == (N, Cout, 2 * H - 1, 2 * W - 1), out.shape
    # bf16 MXU operands -> slightly relaxed tolerance vs. the all-f32 path.
    assert jnp.allclose(out, ref, rtol=1e-2, atol=1e-2), "mismatch vs reference (NB=1)"

    # Batched grid step (amortizes per-step pipeline overhead for larger N).
    out2 = jax.block_until_ready(
        jax.jit(functools.partial(transposed_conv_forward, images_per_step=2))(x, params))
    assert jnp.allclose(out2, ref, rtol=1e-2, atol=1e-2), "mismatch vs reference (NB=2)"

    print("KERNEL_OK")
</pallas_src>

<mosaic_0001>
module attributes {stable_mosaic.version = 11 : i64} {
  func.func @_fused_gn_lrelu_convt_kernel(%arg0: i32, %arg1: memref<1x16x256xf32, #tpu.memory_space<vmem>>, %arg2: memref<16x16xf32, #tpu.memory_space<vmem>>, %arg3: memref<16x1xf32, #tpu.memory_space<vmem>>, %arg4: memref<16x1xf32, #tpu.memory_space<vmem>>, %arg5: memref<32x64xbf16, #tpu.memory_space<vmem>>, %arg6: memref<32x1xf32, #tpu.memory_space<vmem>>, %arg7: memref<1x32x256xf32, #tpu.memory_space<vmem>>) attributes {dimension_semantics = [#tpu.dimension_semantics<parallel>], iteration_bounds = array<i64: 2>, scalar_prefetch = 0 : i64, scratch_operands = 0 : i64, tpu.core_type = #tpu.core_type<tc>, window_params = [{transform_indices = @transform_0, window_bounds = array<i64: 1, 16, 256>}, {pipeline_mode = #tpu.pipeline_mode<synchronous>, transform_indices = @transform_1, window_bounds = array<i64: 16, 16>}, {pipeline_mode = #tpu.pipeline_mode<synchronous>, transform_indices = @transform_2, window_bounds = array<i64: 16, 1>}, {pipeline_mode = #tpu.pipeline_mode<synchronous>, transform_indices = @transform_3, window_bounds = array<i64: 16, 1>}, {pipeline_mode = #tpu.pipeline_mode<synchronous>, transform_indices = @transform_4, window_bounds = array<i64: 32, 64>}, {pipeline_mode = #tpu.pipeline_mode<synchronous>, transform_indices = @transform_5, window_bounds = array<i64: 32, 1>}, {transform_indices = @transform_6, window_bounds = array<i64: 1, 32, 256>}]} {
    %c0 = arith.constant 0 : index
    %c0_0 = arith.constant 0 : index
    %0 = vector.load %arg5[%c0, %c0_0] : memref<32x64xbf16, #tpu.memory_space<vmem>>, vector<32x64xbf16>
    %c0_1 = arith.constant 0 : index
    %c0_2 = arith.constant 0 : index
    %1 = vector.load %arg2[%c0_1, %c0_2] : memref<16x16xf32, #tpu.memory_space<vmem>>, vector<16x16xf32>
    %c0_3 = arith.constant 0 : index
    %c0_4 = arith.constant 0 : index
    %2 = vector.load %arg3[%c0_3, %c0_4] : memref<16x1xf32, #tpu.memory_space<vmem>>, vector<16x1xf32>
    %c0_5 = arith.constant 0 : index
    %c0_6 = arith.constant 0 : index
    %3 = vector.load %arg4[%c0_5, %c0_6] : memref<16x1xf32, #tpu.memory_space<vmem>>, vector<16x1xf32>
    %c0_7 = arith.constant 0 : index
    %c0_8 = arith.constant 0 : index
    %4 = vector.load %arg6[%c0_7, %c0_8] : memref<32x1xf32, #tpu.memory_space<vmem>>, vector<32x1xf32>
    %c0_9 = arith.constant 0 : index
    %c0_10 = arith.constant 0 : index
    %c0_11 = arith.constant 0 : index
    %5 = vector.load %arg1[%c0_9, %c0_10, %c0_11] : memref<1x16x256xf32, #tpu.memory_space<vmem>>, vector<1x16x256xf32>
    %6 = vector.shape_cast %5 : vector<1x16x256xf32> to vector<16x256xf32>
    %cst = arith.constant dense<0.000000e+00> : vector<16xf32>
    %7 = vector.multi_reduction <add>, %6, %cst [1] : vector<16x256xf32> to vector<16xf32>
    %8 = vector.shape_cast %7 : vector<16xf32> to vector<16x1xf32>
    %cst_12 = arith.constant 2.560000e+02 : f32
    %9 = vector.broadcast %cst_12 : f32 to vector<16x1xf32>
    %10 = arith.divf %8, %9 : vector<16x1xf32>
    %11 = arith.mulf %6, %6 : vector<16x256xf32>
    %cst_13 = arith.constant dense<0.000000e+00> : vector<16xf32>
    %12 = vector.multi_reduction <add>, %11, %cst_13 [1] : vector<16x256xf32> to vector<16xf32>
    %13 = vector.shape_cast %12 : vector<16xf32> to vector<16x1xf32>
    %cst_14 = arith.constant 2.560000e+02 : f32
    %14 = vector.broadcast %cst_14 : f32 to vector<16x1xf32>
    %15 = arith.divf %13, %14 : vector<16x1xf32>
    %16 = tpu.concatenate %10, %15 in 1 : vector<16x1xf32>, vector<16x1xf32> -> vector<16x2xf32>
    %cst_15 = arith.constant dense<0.000000e+00> : vector<16x2xf32>
    %17 = tpu.matmul %1, %16, %cst_15 {dimension_numbers = #tpu.dot_dimension_numbers<[1], [0], [0], [1], [0, 0, 1, 1], [], []>} : vector<16x16xf32>, vector<16x2xf32>, vector<16x2xf32> -> vector<16x2xf32>
    %18 = vector.extract_strided_slice %17 {offsets = [0, 0], sizes = [16, 1], strides = [1, 1]} : vector<16x2xf32> to vector<16x1xf32>
    %19 = vector.extract_strided_slice %17 {offsets = [0, 1], sizes = [16, 1], strides = [1, 1]} : vector<16x2xf32> to vector<16x1xf32>
    %20 = arith.mulf %18, %18 : vector<16x1xf32>
    %21 = arith.subf %19, %20 : vector<16x1xf32>
    %cst_16 = arith.constant 9.99999974E-6 : f32
    %22 = vector.broadcast %cst_16 : f32 to vector<16x1xf32>
    %23 = arith.addf %21, %22 : vector<16x1xf32>
    %24 = math.rsqrt %23 : vector<16x1xf32>
    %25 = arith.mulf %24, %2 : vector<16x1xf32>
    %26 = arith.mulf %18, %25 : vector<16x1xf32>
    %27 = arith.subf %3, %26 : vector<16x1xf32>
    %28 = vector.broadcast %25 : vector<16x1xf32> to vector<16x256xf32>
    %29 = arith.mulf %6, %28 : vector<16x256xf32>
    %30 = vector.broadcast %27 : vector<16x1xf32> to vector<16x256xf32>
    %31 = arith.addf %29, %30 : vector<16x256xf32>
    %cst_17 = arith.constant 0.00999999977 : f32
    %32 = vector.broadcast %cst_17 : f32 to vector<16x256xf32>
    %33 = arith.mulf %32, %31 : vector<16x256xf32>
    %34 = arith.maximumf %31, %33 : vector<16x256xf32>
    %c255_i32 = arith.constant 255 : i32
    %35 = tpu.dynamic_rotate %34 by %c255_i32 dim 1 : vector<16x256xf32>, i32 -> vector<16x256xf32>
    %c240_i32 = arith.constant 240 : i32
    %36 = tpu.dynamic_rotate %34 by %c240_i32 dim 1 : vector<16x256xf32>, i32 -> vector<16x256xf32>
    %c239_i32 = arith.constant 239 : i32
    %37 = tpu.dynamic_rotate %34 by %c239_i32 dim 1 : vector<16x256xf32>, i32 -> vector<16x256xf32>
    %38 = tpu.concatenate %34, %35, %36, %37 in 0 : vector<16x256xf32>, vector<16x256xf32>, vector<16x256xf32>, vector<16x256xf32> -> vector<64x256xf32>
    %39 = arith.truncf %38 : vector<64x256xf32> to vector<64x256xbf16>
    %cst_18 = arith.constant dense<0.000000e+00> : vector<32x256xf32>
    %40 = tpu.matmul %0, %39, %cst_18 {dimension_numbers = #tpu.dot_dimension_numbers<[1], [0], [0], [1], [0, 0, 1, 1], [], []>} : vector<32x64xbf16>, vector<64x256xbf16>, vector<32x256xf32> -> vector<32x256xf32>
    %41 = vector.broadcast %4 : vector<32x1xf32> to vector<32x256xf32>
    %42 = arith.addf %40, %41 : vector<32x256xf32>
    %c0_19 = arith.constant 0 : index
    %c0_20 = arith.constant 0 : index
    %c0_21 = arith.constant 0 : index
    %43 = vector.load %arg7[%c0_19, %c0_20, %c0_21] : memref<1x32x256xf32, #tpu.memory_space<vmem>>, vector<1x32x256xf32>
    %44 = vector.shape_cast %43 : vector<1x32x256xf32> to vector<32x256xf32>
    %45 = vector.shape_cast %42 : vector<32x256xf32> to vector<1x32x256xf32>
    tpu.vector_store %arg7[%c0_19, %c0_20, %c0_21], %45 {strides = array<i32>} : memref<1x32x256xf32, #tpu.memory_space<vmem>>, vector<1x32x256xf32>,
    return
  }
  func.func @transform_0(%arg0: i32) -> (i32, i32, i32) {
    %c0_i32 = arith.constant 0 : i32
    %c0_i32_0 = arith.constant 0 : i32
    %c0_i32_1 = arith.constant 0 : i32
    return %arg0, %c0_i32, %c0_i32_0 : i32, i32, i32
  }
  func.func @transform_1(%arg0: i32) -> (i32, i32) {
    %c0_i32 = arith.constant 0 : i32
    %c0_i32_0 = arith.constant 0 : i32
    %c0_i32_1 = arith.constant 0 : i32
    return %c0_i32, %c0_i32_0 : i32, i32
  }
  func.func @transform_2(%arg0: i32) -> (i32, i32) {
    %c0_i32 = arith.constant 0 : i32
    %c0_i32_0 = arith.constant 0 : i32
    %c0_i32_1 = arith.constant 0 : i32
    return %c0_i32, %c0_i32_0 : i32, i32
  }
  func.func @transform_3(%arg0: i32) -> (i32, i32) {
    %c0_i32 = arith.constant 0 : i32
    %c0_i32_0 = arith.constant 0 : i32
    %c0_i32_1 = arith.constant 0 : i32
    return %c0_i32, %c0_i32_0 : i32, i32
  }
  func.func @transform_4(%arg0: i32) -> (i32, i32) {
    %c0_i32 = arith.constant 0 : i32
    %c0_i32_0 = arith.constant 0 : i32
    %c0_i32_1 = arith.constant 0 : i32
    return %c0_i32, %c0_i32_0 : i32, i32
  }
  func.func @transform_5(%arg0: i32) -> (i32, i32) {
    %c0_i32 = arith.constant 0 : i32
    %c0_i32_0 = arith.constant 0 : i32
    %c0_i32_1 = arith.constant 0 : i32
    return %c0_i32, %c0_i32_0 : i32, i32
  }
  func.func @transform_6(%arg0: i32) -> (i32, i32, i32) {
    %c0_i32 = arith.constant 0 : i32
    %c0_i32_0 = arith.constant 0 : i32
    %c0_i32_1 = arith.constant 0 : i32
    return %arg0, %c0_i32, %c0_i32_0 : i32, i32, i32
  }
}

</mosaic_0001>

<llo_original>
// kernel: tile.8
$region0: #{tile.8}
  #allocation2 [shape = 's32[1]{0}', space=sflag, size = 0x4, scoped, tag = 'scoped memory for tile.8']
  %s0 = inlined_call_operand.hbm [shape: f32[8], index: 0, kind: input, shape index: {}]
  %s1 = inlined_call_operand.vmem [shape: f32[4,8], index: 1, kind: output, shape index: {}]
  $region1: #{tile.8} parent=0
    #allocation0 [shape = 'u8[512]{0}', space=vmem, size = 0x400, scoped, tag = 'operand span for operand 0']
    #allocation1 [shape = 's32[1]{0}', space=sflag, size = 0x4, scoped, tag = 'scoped memory for tile.8']
    %2 = vsyncpa [#allocation1], 0
    // Predicated region
    $region2: #{tile.8} parent=1 // pred_check
      _
    $region3: #{tile.8} parent=1 // pred_check_branch
      %4 = sbr.rel (0) target = $region5
    $region4: #{tile.8} parent=1 // pred_region
      %s6 = ssub.s32 16, 16
      %7 = vsyncadd [#allocation1], %s6
      %s9 = sshll.u32 [#allocation0], 4
      %s10 = int_to_ptr.vmem [resolvable:$true] %s9
      %12 = dma.hbm_to_vmem [thread:$0]  %s0, 16, %s10, [#allocation1]
    $region5: #{tile.8} parent=1 // pred_fallthru
      _
    // Predicated region
    $region6: #{tile.8} parent=1 // pred_check
      _
    $region7: #{tile.8} parent=1 // pred_check_branch
      %14 = sbr.rel (0) target = $region9
    $region8: #{tile.8} parent=1 // pred_region
      %15 = dma.done [#allocation1], 16
    $region9: #{tile.8} parent=1 // pred_fallthru
      _
    %v16 = vld [vmem:[#allocation0] ss:$0 sm:$0xff]
    %17 = vst [vmem:[%s1] sm:$0xf] %v16
    %18 = vsyncpa [#allocation1], 1

// kernel: tile.0
$region0: #{tile.0}
  %s0 = inlined_call_operand.vmem [shape: f32[4,8], index: 0, kind: input, shape index: {}]
  %s1 = inlined_call_operand.vmem [shape: f32[32,1], index: 1, kind: output, shape index: {}]
  $region1: #{tile.0} parent=0
    #allocation0 [shape = 'u8[4096]{0}', space=vmem, size = 0x1000, scoped, tag = 'scoped mem for input reshape']
    %s3 = sshllo.u32 0, 4
    %v4 = vld [vmem:[%s0] sm:%s3]
    %5 = vst [vmem:[#allocation0] sm:%s3] %v4
    %v6 = vld [vmem:[#allocation0] sm:$0xf]
    %vm7 = vcmask 7168
    %8 = vst.msk [vmem:[%s1] ss:$8 sm:$0xf] %vm7, %v6
    %v9 = vld [vmem:[#allocation0] sm:$0xf]
    %10 = vrot.lane.b32.xlu0 %v9, 127
    %v11 = vpop.permute.xlu0 %10
    %vm12 = vcmask 7168
    %s13 = scalar_lea.vmem %s1, 1
    %14 = vst.msk [vmem:[%s13] ss:$8 sm:$0xf] %vm12, %v11
    %v15 = vld [vmem:[#allocation0] sm:$0xf]
    %16 = vrot.lane.b32.xlu0 %v15, 126
    %v17 = vpop.permute.xlu0 %16
    %vm18 = vcmask 7168
    %s19 = scalar_lea.vmem %s1, 2
    %20 = vst.msk [vmem:[%s19] ss:$8 sm:$0xf] %vm18, %v17
    %v21 = vld [vmem:[#allocation0] sm:$0xf]
    %22 = vrot.lane.b32.xlu0 %v21, 125
    %v23 = vpop.permute.xlu0 %22
    %vm24 = vcmask 7168
    %s25 = scalar_lea.vmem %s1, 3
    %26 = vst.msk [vmem:[%s25] ss:$8 sm:$0xf] %vm24, %v23
    %v27 = vld [vmem:[#allocation0] sm:$0xf]
    %28 = vrot.lane.b32.xlu0 %v27, 124
    %v29 = vpop.permute.xlu0 %28
    %vm30 = vcmask 7168
    %s31 = scalar_lea.vmem %s1, 4
    %32 = vst.msk [vmem:[%s31] ss:$8 sm:$0xf] %vm30, %v29
    %v33 = vld [vmem:[#allocation0] sm:$0xf]
    %34 = vrot.lane.b32.xlu0 %v33, 123
    %v35 = vpop.permute.xlu0 %34
    %vm36 = vcmask 7168
    %s37 = scalar_lea.vmem %s1, 5
    %38 = vst.msk [vmem:[%s37] ss:$8 sm:$0xf] %vm36, %v35
    %v39 = vld [vmem:[#allocation0] sm:$0xf]
    %40 = vrot.lane.b32.xlu0 %v39, 122
    %v41 = vpop.permute.xlu0 %40
    %vm42 = vcmask 7168
    %s43 = scalar_lea.vmem %s1, 6
    %44 = vst.msk [vmem:[%s43] ss:$8 sm:$0xf] %vm42, %v41
    %v45 = vld [vmem:[#allocation0] sm:$0xf]
    %46 = vrot.lane.b32.xlu0 %v45, 121
    %v47 = vpop.permute.xlu0 %46
    %vm48 = vcmask 7168
    %s49 = scalar_lea.vmem %s1, 7
    %50 = vst.msk [vmem:[%s49] ss:$8 sm:$0xf] %vm48, %v47

// kernel: transposed_conv_forward.1
$region0: #{transposed_conv_forward.1}
  #allocation0 [shape = 'u32[]', space=smem, size = 0x4, offset = 0x4, fixed_abs, tag = 'smem constant byte address 0x4 - core index']
  #allocation1 [shape = 'u32[144,128]{1,0:T(1,128)}', space=vmem, size = 0x12000, scoped, tag = 'internal scratch']
  %s0 = inlined_call_operand.vmem [shape: f32[2,16,256], index: 0, kind: input, shape index: {}]
  %s1 = inlined_call_operand.vmem [shape: f32[16,16], index: 1, kind: input, shape index: {}]
  %s2 = inlined_call_operand.vmem [shape: f32[16,1], index: 2, kind: input, shape index: {}]
  %s3 = inlined_call_operand.vmem [shape: f32[16,1], index: 3, kind: input, shape index: {}]
  %s4 = inlined_call_operand.vmem [shape: bf16[32,64], index: 4, kind: input, shape index: {}]
  %s5 = inlined_call_operand.vmem [shape: f32[32,1], index: 5, kind: input, shape index: {}]
  %s6 = inlined_call_operand.vmem [shape: f32[2,32,256], index: 6, kind: output, shape index: {}]
  %s7 = sld [smem:[#allocation0]]
  $region57: #{transposed_conv_forward.1} parent=0
    _
  %s9 = ssub.s32 1, %s7
  %s10 = scalar_select 0, %s9, %s7
  loop: start=0, step=1, limit=4
  $region2: #{transposed_conv_forward.1} parent=0 // loop_pre_header
    _
  $region3: #{transposed_conv_forward.1} parent=0 // loop_header
    %s12 = sphi 0, %s16
    %p13 = scmp.ge.s32.totalorder %s12, 4
    %s22 = sphi 0, %s24
    %s25 = sphi 0, %s22
    %s26 = sphi 0, %s25
    %s42 = sphi 0, %s26
    %s46 = sphi 0, %s46
    %s48 = sphi 0, %s46
    %s49 = sphi 0, %s48
    %s63 = sphi 0, %s49
    %s67 = sphi 0, %s67
    %s69 = sphi 0, %s67
    %s70 = sphi 0, %s69
    %s84 = sphi 0, %s70
    %s88 = sphi 0, %s88
    %s90 = sphi 0, %s88
    %s91 = sphi 0, %s90
    %s105 = sphi 0, %s91
    %s109 = sphi 0, %s109
    %s111 = sphi 0, %s109
    %s112 = sphi 0, %s111
    %s126 = sphi 0, %s112
    %s130 = sphi 0, %s130
    %s132 = sphi 0, %s130
    %s133 = sphi 0, %s132
    %s147 = sphi 0, %s133
    %s153 = sphi 0, %s155
    %s156 = sphi 0, %s153
    %s157 = sphi 0, %s156
    %s173 = sphi 0, %s157
  $region4: #{transposed_conv_forward.1} parent=0 // loop_header_branch
    %15 = sbr.rel (%p13) target = $region8
  $region5: #{transposed_conv_forward.1} parent=0 // loop_body
    %s17 = ssub.s32 %s12, 1
    %s18 = ssub.s32 %s12, 2
    %s19 = sadd.s32 %s12, 1
    %s20 = ssub.s32 %s12, %s19
    %p21 = scmp.eq.s32.totalorder %s20, 0
    %s23 = sadd.s32 %s22, 1
    %s24 = scalar_select %p21, %s22, %s23
    %p27 = pneg %p21
    %p28 = scmp.eq.s32.totalorder %s12, 1
    %p29 = por %p27, %p28
    %p30 = scmp.ne.s32.totalorder %s22, %s25
    %p31 = scmp.eq.s32.totalorder %s12, 0
    %p32 = por %p30, %p31
    %p33 = scmp.ne.s32.totalorder %s22, %s25
    %p34 = scmp.eq.s32.totalorder %s17, 1
    %p35 = por %p33, %p34
    %p36 = scmp.ne.s32.totalorder %s25, %s26
    %p37 = scmp.eq.s32.totalorder %s17, 0
    %p38 = por %p36, %p37
    %p39 = scmp.ne.s32.totalorder %s25, %s26
    %p40 = scmp.eq.s32.totalorder %s18, 1
    %p41 = por %p39, %p40
    %p43 = scmp.ne.s32.totalorder %s26, %s42
    %p44 = scmp.eq.s32.totalorder %s18, 0
    %p45 = por %p43, %p44
    %s47 = sadd.s32 %s46, 1
    %p50 = scmp.eq.s32.totalorder %s12, 1
    %p51 = scmp.ne.s32.totalorder %s46, %s48
    %p52 = scmp.eq.s32.totalorder %s12, 0
    %p53 = por %p51, %p52
    %p54 = scmp.ne.s32.totalorder %s46, %s48
    %p55 = scmp.eq.s32.totalorder %s17, 1
    %p56 = por %p54, %p55
    %p57 = scmp.ne.s32.totalorder %s48, %s49
    %p58 = scmp.eq.s32.totalorder %s17, 0
    %p59 = por %p57, %p58
    %p60 = scmp.ne.s32.totalorder %s48, %s49
    %p61 = scmp.eq.s32.totalorder %s18, 1
    %p62 = por %p60, %p61
    %p64 = scmp.ne.s32.totalorder %s49, %s63
    %p65 = scmp.eq.s32.totalorder %s18, 0
    %p66 = por %p64, %p65
    %s68 = sadd.s32 %s67, 1
    %p71 = scmp.eq.s32.totalorder %s12, 1
    %p72 = scmp.ne.s32.totalorder %s67, %s69
    %p73 = scmp.eq.s32.totalorder %s12, 0
    %p74 = por %p72, %p73
    %p75 = scmp.ne.s32.totalorder %s67, %s69
    %p76 = scmp.eq.s32.totalorder %s17, 1
    %p77 = por %p75, %p76
    %p78 = scmp.ne.s32.totalorder %s69, %s70
    %p79 = scmp.eq.s32.totalorder %s17, 0
    %p80 = por %p78, %p79
    %p81 = scmp.ne.s32.totalorder %s69, %s70
    %p82 = scmp.eq.s32.totalorder %s18, 1
    %p83 = por %p81, %p82
    %p85 = scmp.ne.s32.totalorder %s70, %s84
    %p86 = scmp.eq.s32.totalorder %s18, 0
    %p87 = por %p85, %p86
    %s89 = sadd.s32 %s88, 1
    %p92 = scmp.eq.s32.totalorder %s12, 1
    %p93 = scmp.ne.s32.totalorder %s88, %s90
    %p94 = scmp.eq.s32.totalorder %s12, 0
    %p95 = por %p93, %p94
    %p96 = scmp.ne.s32.totalorder %s88, %s90
    %p97 = scmp.eq.s32.totalorder %s17, 1
    %p98 = por %p96, %p97
    %p99 = scmp.ne.s32.totalorder %s90, %s91
    %p100 = scmp.eq.s32.totalorder %s17, 0
    %p101 = por %p99, %p100
    %p102 = scmp.ne.s32.totalorder %s90, %s91
    %p103 = scmp.eq.s32.totalorder %s18, 1
    %p104 = por %p102, %p103
    %p106 = scmp.ne.s32.totalorder %s91, %s105
    %p107 = scmp.eq.s32.totalorder %s18, 0
    %p108 = por %p106, %p107
    %s110 = sadd.s32 %s109, 1
    %p113 = scmp.eq.s32.totalorder %s12, 1
    %p114 = scmp.ne.s32.totalorder %s109, %s111
    %p115 = scmp.eq.s32.totalorder %s12, 0
    %p116 = por %p114, %p115
    %p117 = scmp.ne.s32.totalorder %s109, %s111
    %p118 = scmp.eq.s32.totalorder %s17, 1
    %p119 = por %p117, %p118
    %p120 = scmp.ne.s32.totalorder %s111, %s112
    %p121 = scmp.eq.s32.totalorder %s17, 0
    %p122 = por %p120, %p121
    %p123 = scmp.ne.s32.totalorder %s111, %s112
    %p124 = scmp.eq.s32.totalorder %s18, 1
    %p125 = por %p123, %p124
    %p127 = scmp.ne.s32.totalorder %s112, %s126
    %p128 = scmp.eq.s32.totalorder %s18, 0
    %p129 = por %p127, %p128
    %s131 = sadd.s32 %s130, 1
    %p134 = scmp.eq.s32.totalorder %s12, 1
    %p135 = scmp.ne.s32.totalorder %s130, %s132
    %p136 = scmp.eq.s32.totalorder %s12, 0
    %p137 = por %p135, %p136
    %p138 = scmp.ne.s32.totalorder %s130, %s132
    %p139 = scmp.eq.s32.totalorder %s17, 1
    %p140 = por %p138, %p139
    %p141 = scmp.ne.s32.totalorder %s132, %s133
    %p142 = scmp.eq.s32.totalorder %s17, 0
    %p143 = por %p141, %p142
    %p144 = scmp.ne.s32.totalorder %s132, %s133
    %p145 = scmp.eq.s32.totalorder %s18, 1
    %p146 = por %p144, %p145
    %p148 = scmp.ne.s32.totalorder %s133, %s147
    %p149 = scmp.eq.s32.totalorder %s18, 0
    %p150 = por %p148, %p149
    %s151 = ssub.s32 %s12, %s19
    %p152 = scmp.eq.s32.totalorder %s151, 0
    %s154 = sadd.s32 %s153, 1
    %s155 = scalar_select %p152, %s153, %s154
    %p158 = pneg %p152
    %p159 = scmp.eq.s32.totalorder %s12, 1
    %p160 = por %p158, %p159
    %p161 = scmp.ne.s32.totalorder %s153, %s156
    %p162 = scmp.eq.s32.totalorder %s12, 0
    %p163 = por %p161, %p162
    %p164 = scmp.ne.s32.totalorder %s153, %s156
    %p165 = scmp.eq.s32.totalorder %s17, 1
    %p166 = por %p164, %p165
    %p167 = scmp.ne.s32.totalorder %s156, %s157
    %p168 = scmp.eq.s32.totalorder %s17, 0
    %p169 = por %p167, %p168
    %p170 = scmp.ne.s32.totalorder %s156, %s157
    %p171 = scmp.eq.s32.totalorder %s18, 1
    %p172 = por %p170, %p171
    %p174 = scmp.ne.s32.totalorder %s157, %s173
    %p175 = scmp.eq.s32.totalorder %s18, 0
    %p176 = por %p174, %p175
    %p177 = scmp.le.s32.totalorder 1, %s12
    %p178 = scmp.lt.s32.totalorder %s12, 3
    %p179 = pnand %p177, %p178
    %p180 = pneg %p179
    // Predicated region
    $region9: #{transposed_conv_forward.1} parent=5 // pred_check
      _
    $region10: #{transposed_conv_forward.1} parent=5 // pred_check_branch
      %182 = sbr.rel (%p179) target = $region12
    $region11: #{transposed_conv_forward.1} parent=5 // pred_region
      %s183 = ssub.s32 %s12, 1
      // Predicated region
      $region13: #{transposed_conv_forward.1} parent=11 // pred_check
        %p184 = pneg %p59
      $region14: #{transposed_conv_forward.1} parent=11 // pred_check_branch
        %186 = sbr.rel (%p184) target = $region16
      $region15: #{transposed_conv_forward.1} parent=11 // pred_region
        _
      $region16: #{transposed_conv_forward.1} parent=11 // pred_fallthru
        _
      // Predicated region
      $region17: #{transposed_conv_forward.1} parent=11 // pred_check
        %p187 = pneg %p80
      $region18: #{transposed_conv_forward.1} parent=11 // pred_check_branch
        %189 = sbr.rel (%p187) target = $region20
      $region19: #{transposed_conv_forward.1} parent=11 // pred_region
        _
      $region20: #{transposed_conv_forward.1} parent=11 // pred_fallthru
        _
      // Predicated region
      $region21: #{transposed_conv_forward.1} parent=11 // pred_check
        %p190 = pneg %p101
      $region22: #{transposed_conv_forward.1} parent=11 // pred_check_branch
        %192 = sbr.rel (%p190) target = $region24
      $region23: #{transposed_conv_forward.1} parent=11 // pred_region
        _
      $region24: #{transposed_conv_forward.1} parent=11 // pred_fallthru
        _
      // Predicated region
      $region25: #{transposed_conv_forward.1} parent=11 // pred_check
        %p193 = pneg %p122
      $region26: #{transposed_conv_forward.1} parent=11 // pred_check_branch
        %195 = sbr.rel (%p193) target = $region28
      $region27: #{transposed_conv_forward.1} parent=11 // pred_region
        _
      $region28: #{transposed_conv_forward.1} parent=11 // pred_fallthru
        _
      // Predicated region
      $region29: #{transposed_conv_forward.1} parent=11 // pred_check
        %p196 = pneg %p143
      $region30: #{transposed_conv_forward.1} parent=11 // pred_check_branch
        %198 = sbr.rel (%p196) target = $region32
      $region31: #{transposed_conv_forward.1} parent=11 // pred_region
        _
      $region32: #{transposed_conv_forward.1} parent=11 // pred_fallthru
        _
    $region12: #{transposed_conv_forward.1} parent=5 // pred_fallthru
      _
    %p199 = scmp.lt.s32.totalorder %s12, 2
    // Predicated region
    $region33: #{transposed_conv_forward.1} parent=5 // pred_check
      %p200 = pneg %p199
    $region34: #{transposed_conv_forward.1} parent=5 // pred_check_branch
      %202 = sbr.rel (%p200) target = $region36
    $region35: #{transposed_conv_forward.1} parent=5 // pred_region
      // Predicated region
      $region37: #{transposed_conv_forward.1} parent=35 // pred_check
        %p203 = pneg %p32
      $region38: #{transposed_conv_forward.1} parent=35 // pred_check_branch
        %205 = sbr.rel (%p203) target = $region40
      $region39: #{transposed_conv_forward.1} parent=35 // pred_region
        %p206 = scmp.lt.s32.totalorder %s12, 1
        %s207 = scalar_select %p206, %s12, 1
        %s208 = smul.addr %s207, 4
        %s209 = smul.addr %s208, 8
        %s210 = scalar_lea.vmem %s0, %s209
      $region40: #{transposed_conv_forward.1} parent=35 // pred_fallthru
        _
    $region36: #{transposed_conv_forward.1} parent=5 // pred_fallthru
      _
    %p211 = scmp.le.s32.totalorder 1, %s12
    %p212 = scmp.lt.s32.totalorder %s12, 3
    %p213 = pnand %p211, %p212
    %p214 = pneg %p213
    // Predicated region
    $region41: #{transposed_conv_forward.1} parent=5 // pred_check
      _
    $region42: #{transposed_conv_forward.1} parent=5 // pred_check_branch
      %216 = sbr.rel (%p213) target = $region44
    $region43: #{transposed_conv_forward.1} parent=5 // pred_region
      %s217 = ssub.s32 %s12, 1
      %p218 = scmp.lt.s32.totalorder %s17, 1
      %s219 = scalar_select %p218, %s17, 1
      %s220 = smul.addr %s219, 4
      %s221 = smul.addr %s220, 8
      %s222 = scalar_lea.vmem %s0, %s221
      %p223 = pneg %p38
      %p224 = pneg %p35
      %p225 = pneg %p59
      %p226 = pneg %p56
      %p227 = pneg %p80
      %p228 = pneg %p77
      %p229 = pneg %p101
      %p230 = pneg %p98
      %p231 = pneg %p122
      %p232 = pneg %p119
      %p233 = pneg %p143
      %p234 = pneg %p140
      %p235 = pneg %p169
      %p236 = pneg %p166
      %p237 = scmp.lt.s32.totalorder %s17, 1
      %s238 = scalar_select %p237, %s17, 1
      %s239 = smul.addr %s238, 8
      %s240 = smul.addr %s239, 8
      %s241 = scalar_lea.vmem %s6, %s240
      %p242 = scmp.lt.s32.totalorder %s17, 1
      %s243 = scalar_select %p242, %s17, 1
      %s244 = smul.addr %s243, 4
      %s245 = smul.addr %s244, 8
      %s246 = scalar_lea.vmem %s0, %s245
      %p247 = scmp.lt.s32.totalorder %s17, 1
      %s248 = scalar_select %p247, %s17, 1
      %s249 = smul.addr %s248, 8
      %s250 = smul.addr %s249, 8
      %s251 = scalar_lea.vmem %s6, %s250
      %v253 = vld [vmem:[%s4] sm:$0xf]
      %v254 = vld [vmem:[%s4 + $0x4] sm:$0xf]
      %v255 = vld [vmem:[%s4 + $0x8] sm:$0xf]
      %v256 = vld [vmem:[%s4 + $0xc] sm:$0xf]
      %v257 = vld [vmem:[%s1] sm:$0xff]
      %v258 = vld [vmem:[%s1 + $0x8] sm:$0xff]
      %v259 = vld [vmem:[%s2] sm:$0xff]
      %v260 = vld [vmem:[%s2 + $0x8] sm:$0xff]
      %v261 = vld [vmem:[%s3] sm:$0xff]
      %v262 = vld [vmem:[%s3 + $0x8] sm:$0xff]
      %v263 = vld [vmem:[%s5] sm:$0xff]
      %v264 = vld [vmem:[%s5 + $0x8] sm:$0xff]
      %v265 = vld [vmem:[%s5 + $0x10] sm:$0xff]
      %v266 = vld [vmem:[%s5 + $0x18] sm:$0xff]
      %v267 = vld [vmem:[%s246] sm:$0xff]
      %v268 = vld [vmem:[%s246 + $0x8] sm:$0xff]
      %v269 = vld [vmem:[%s246 + $0x10] sm:$0xff]
      %v270 = vld [vmem:[%s246 + $0x18] sm:$0xff]
      %v271 = vadd.f32 %v267, %v268
      %272 = vadd.xlane.f32.xlu0 %v271
      %v273 = vpop.xlane.xlu0 %272
      %v274 = vadd.f32 %v269, %v270
      %275 = vadd.xlane.f32.xlu0 %v274
      %v276 = vpop.xlane.xlu0 %275
      %v277 = vrcp.pop 256.0
      %v278 = vmul.f32 %v273, %v277
      %v279 = vmul.f32 %v276, %v277
      %v280 = vmul.f32 %v267, %v267
      %v281 = vmul.f32 %v268, %v268
      %v282 = vmul.f32 %v269, %v269
      %v283 = vmul.f32 %v270, %v270
      %v284 = vadd.f32 %v280, %v281
      %285 = vadd.xlane.f32.xlu0 %v284
      %v286 = vpop.xlane.xlu0 %285
      %v287 = vadd.f32 %v282, %v283
      %288 = vadd.xlane.f32.xlu0 %v287
      %v289 = vpop.xlane.xlu0 %288
      %v290 = vmul.f32 %v286, %v277
      %v291 = vmul.f32 %v289, %v277
      %vm292 = vcmask 7168
      %v293 = vsel %vm292, %v278, %v290
      %v294 = vsel %vm292, %v279, %v291
      %vm295 = vcmask 130048
      %v297 = vsel %vm295, %v257, 0
      %v300 = vsel %vm295, %v258, 0
      %302 = vmatprep.subr.mxu0 0.0
      %303 = vmatpush1.msra.mxu0 %v293
      %304 = vmatprep.subr.mxu0 0.0
      %305 = vmatpush1.msra.mxu0 %v294
      %306 = vmatprep.subr.mxu0 0.0
      %307 = vmatpush1.msra.mxu0 0.0
      %308 = vmatprep.subr.mxu0 0.0
      %309 = vmatpush1.msra.mxu0 0.0
      %310 = vmatprep.subr.mxu0 0.0
      %311 = vmatpush1.msra.mxu0 0.0
      %312 = vmatprep.subr.mxu0 0.0
      %313 = vmatpush1.msra.mxu0 0.0
      %314 = vmatprep.subr.mxu0 0.0
      %315 = vmatpush1.msra.mxu0 0.0
      %316 = vmatprep.subr.mxu0 0.0
      %317 = vmatpush1.msra.mxu0 0.0
      %318 = vmatprep.subr.mxu0 0.0
      %319 = vmatpush1.msra.mxu0 0.0
      %320 = vmatprep.subr.mxu0 0.0
      %321 = vmatpush1.msra.mxu0 0.0
      %322 = vmatprep.subr.mxu0 0.0
      %323 = vmatpush1.msra.mxu0 0.0
      %324 = vmatprep.subr.mxu0 0.0
      %325 = vmatpush1.msra.mxu0 0.0
      %326 = vmatprep.subr.mxu0 0.0
      %327 = vmatpush1.msra.mxu0 0.0
      %328 = vmatprep.subr.mxu0 0.0
      %329 = vmatpush1.msra.mxu0 0.0
      %330 = vmatprep.subr.mxu0 0.0
      %331 = vmatpush1.msra.mxu0 0.0
      %332 = vmatprep.subr.mxu0 0.0
      %333 = vmatpush1.msra.mxu0 0.0
      %334 = vmatprep.subr.mxu0 0.0
      %335 = vmatpush1.msra.mxu0 0.0
      %336 = vmatprep.subr.mxu0 0.0
      %337 = vmatpush1.msra.mxu0 0.0
      %338 = vmatprep.subr.mxu0 0.0
      %339 = vmatpush1.msra.mxu0 0.0
      %340 = vmatprep.subr.mxu0 0.0
      %341 = vmatpush1.msra.mxu0 0.0
      %342 = vmatprep.subr.mxu0 0.0
      %343 = vmatpush1.msra.mxu0 0.0
      %344 = vmatprep.subr.mxu0 0.0
      %345 = vmatpush1.msra.mxu0 0.0
      %346 = vmatprep.subr.mxu0 0.0
      %347 = vmatpush1.msra.mxu0 0.0
      %348 = vmatprep.subr.mxu0 0.0
      %349 = vmatpush1.msra.mxu0 0.0
      %350 = vmatprep.subr.mxu0 0.0
      %351 = vmatpush1.msra.mxu0 0.0
      %352 = vmatprep.subr.mxu0 0.0
      %353 = vmatpush1.msra.mxu0 0.0
      %354 = vmatprep.subr.mxu0 0.0
      %355 = vmatpush1.msra.mxu0 0.0
      %356 = vmatprep.subr.mxu0 0.0
      %357 = vmatpush1.msra.mxu0 0.0
      %358 = vmatprep.subr.mxu0 0.0
      %359 = vmatpush1.msra.mxu0 0.0
      %360 = vmatprep.subr.mxu0 0.0
      %361 = vmatpush1.msra.mxu0 0.0
      %362 = vmatprep.subr.mxu0 0.0
      %363 = vmatpush1.msra.mxu0 0.0
      %364 = vmatprep.subr.mxu0 0.0
      %365 = vmatpush1.msra.mxu0 0.0
      %366 = vmatprep.mubr.f32.mxu0 0.0
      %367 = vmatmul.mubr.f32.gmra.mrb[0].mxu0 %v297
      %v368 = vpop.f32.mrb[0].mxu0
      %v369 = vadd.f32 0.0, %v368
      %v370 = vpop.f32.mrb[0].mxu0
      %371 = vmatprep.mubr.f32.mxu0 0.0
      %372 = vmatmul.mubr.f32.gmra.mrb[0].mxu0 %v300
      %v373 = vpop.f32.mrb[0].mxu0
      %v374 = vadd.f32 0.0, %v373
      %v375 = vpop.f32.mrb[0].mxu0
      %376 = vdwg.mxu0
      %v377 = vmul.f32 %v369, %v369
      %v378 = vmul.f32 %v374, %v374
      %381 = vrot.lane.b32.xlu0 %v377, 1
      %v382 = vpop.permute.xlu0 %381
      %383 = vrot.lane.b32.xlu0 %v378, 1
      %v384 = vpop.permute.xlu0 %383
      %v387 = vsub.f32 %v369, %v382
      %v388 = vsub.f32 %v374, %v384
      %v389 = vadd.f32 %v387, 1e-05
      %v390 = vadd.f32 %v388, 1e-05
      %v391 = vrsqrt.pop %v389
      %v392 = vrsqrt.pop %v390
      %395 = vrot.lane.b32.xlu0 %v259, 1
      %v396 = vpop.permute.xlu0 %395
      %397 = vrot.lane.b32.xlu0 %v260, 1
      %v398 = vpop.permute.xlu0 %397
      %v401 = vmul.f32 %v391, %v396
      %v402 = vmul.f32 %v392, %v398
      %405 = vrot.lane.b32.xlu0 %v401, 127
      %v406 = vpop.permute.xlu0 %405
      %407 = vrot.lane.b32.xlu0 %v402, 127
      %v408 = vpop.permute.xlu0 %407
      %v411 = vmul.f32 %v369, %v406
      %v412 = vmul.f32 %v374, %v408
      %v413 = vsub.f32 %v261, %v411
      %v414 = vsub.f32 %v262, %v412
      %415 = vset.pattern.permute.xlu0 1
      %416 = vperm.xlu0 %415, %v401
      %v417 = vpop.permute.xlu0 %416
      %419 = vset.pattern.permute.xlu0 1
      %420 = vperm.xlu0 %419, %v402
      %v421 = vpop.permute.xlu0 %420
      %v423 = vmul.f32 %v267, %v417
      %v424 = vmul.f32 %v268, %v417
      %v425 = vmul.f32 %v269, %v421
      %v426 = vmul.f32 %v270, %v421
      %428 = vset.pattern.permute.xlu0 0
      %429 = vperm.xlu0 %428, %v413
      %v430 = vpop.permute.xlu0 %429
      %433 = vset.pattern.permute.xlu0 0
      %434 = vperm.xlu0 %433, %v414
      %v435 = vpop.permute.xlu0 %434
      %v437 = vadd.f32 %v423, %v430
      %v438 = vadd.f32 %v424, %v430
      %v439 = vadd.f32 %v425, %v435
      %v440 = vadd.f32 %v426, %v435
      %v441 = vmul.f32 %v437, 0.01
      %v442 = vmul.f32 %v438, 0.01
      %v443 = vmul.f32 %v439, 0.01
      %v444 = vmul.f32 %v440, 0.01
      %v445 = vmax.f32 %v437, %v441
      %v446 = vmax.f32 %v438, %v442
      %v447 = vmax.f32 %v439, %v443
      %v448 = vmax.f32 %v440, %v444
      %449 = vrot.lane.b32.xlu0 %v445, 127
      %v450 = vpop.permute.xlu0 %449
      %451 = vrot.lane.b32.xlu0 %v447, 127
      %v452 = vpop.permute.xlu0 %451
      %453 = vrot.lane.b32.xlu0 %v446, 127
      %v454 = vpop.permute.xlu0 %453
      %455 = vrot.lane.b32.xlu0 %v448, 127
      %v456 = vpop.permute.xlu0 %455
      %v457 = vlaneseq
      %v458 = vand.u32 %v457, 127
      %vm459 = vcmp.lt.s32.totalorder %v458, 127
      %v460 = vsel %vm459, %v450, %v454
      %v461 = vsel %vm459, %v452, %v456
      %v462 = vsel %vm459, %v454, %v450
      %v463 = vsel %vm459, %v456, %v452
      %464 = vrot.lane.b32.xlu0 %v445, 112
      %v465 = vpop.permute.xlu0 %464
      %466 = vrot.lane.b32.xlu0 %v447, 112
      %v467 = vpop.permute.xlu0 %466
      %468 = vrot.lane.b32.xlu0 %v446, 112
      %v469 = vpop.permute.xlu0 %468
      %470 = vrot.lane.b32.xlu0 %v448, 112
      %v471 = vpop.permute.xlu0 %470
      %vm472 = vcmp.lt.s32.totalorder %v458, 112
      %v473 = vsel %vm472, %v465, %v469
      %v474 = vsel %vm472, %v467, %v471
      %v475 = vsel %vm472, %v469, %v465
      %v476 = vsel %vm472, %v471, %v467
      %477 = vrot.lane.b32.xlu0 %v445, 111
      %v478 = vpop.permute.xlu0 %477
      %479 = vrot.lane.b32.xlu0 %v447, 111
      %v480 = vpop.permute.xlu0 %479
      %481 = vrot.lane.b32.xlu0 %v446, 111
      %v482 = vpop.permute.xlu0 %481
      %483 = vrot.lane.b32.xlu0 %v448, 111
      %v484 = vpop.permute.xlu0 %483
      %vm485 = vcmp.lt.s32.totalorder %v458, 111
      %v486 = vsel %vm485, %v478, %v482
      %v487 = vsel %vm485, %v480, %v484
      %v488 = vsel %vm485, %v482, %v478
      %v489 = vsel %vm485, %v484, %v480
      %v490 = vpack.c.bf16 %v447, %v445
      %v491 = vpack.c.bf16 %v448, %v446
      %v492 = vpack.c.bf16 %v461, %v460
      %v493 = vpack.c.bf16 %v463, %v462
      %v494 = vpack.c.bf16 %v474, %v473
      %v495 = vpack.c.bf16 %v476, %v475
      %v496 = vpack.c.bf16 %v487, %v486
      %v497 = vpack.c.bf16 %v489, %v488
      %499 = vset.pattern.permute.xlu0 0
      %500 = vperm.xlu0 %499, %v263
      %v501 = vpop.permute.xlu0 %500
      %504 = vset.pattern.permute.xlu0 0
      %505 = vperm.xlu0 %504, %v264
      %v506 = vpop.permute.xlu0 %505
      %509 = vset.pattern.permute.xlu0 0
      %510 = vperm.xlu0 %509, %v265
      %v511 = vpop.permute.xlu0 %510
      %514 = vset.pattern.permute.xlu0 0
      %515 = vperm.xlu0 %514, %v266
      %v516 = vpop.permute.xlu0 %515
      %v522 = vunpack.c.l.b16 %v253
      %v523 = vunpack.c.l.b16 %v254
      %v524 = vunpack.c.l.b16 %v255
      %v525 = vunpack.c.l.b16 %v256
      %v526 = vpack.c.b16 %v523, %v522
      %v527 = vpack.c.b16 %v525, %v524
      %vm528 = vcmask 523264
      %v530 = vsel %vm528, %v526, 0
      %v533 = vsel %vm528, %v527, 0
      %535 = vmatprep.subr.bf16.mxu0 %v491
      %536 = vmatpush1.bf16.msra.mxu0 %v490
      %537 = vmatprep.subr.bf16.mxu0 %v493
      %538 = vmatpush1.bf16.msra.mxu0 %v492
      %539 = vmatprep.subr.bf16.mxu0 %v495
      %540 = vmatpush1.bf16.msra.mxu0 %v494
      %541 = vmatprep.subr.bf16.mxu0 %v497
      %542 = vmatpush1.bf16.msra.mxu0 %v496
      %543 = vmatprep.subr.bf16.mxu0 0
      %544 = vmatpush1.bf16.msra.mxu0 0
      %545 = vmatprep.subr.bf16.mxu0 0
      %546 = vmatpush1.bf16.msra.mxu0 0
      %547 = vmatprep.subr.bf16.mxu0 0
      %548 = vmatpush1.bf16.msra.mxu0 0
      %549 = vmatprep.subr.bf16.mxu0 0
      %550 = vmatpush1.bf16.msra.mxu0 0
      %551 = vmatprep.subr.bf16.mxu0 0
      %552 = vmatpush1.bf16.msra.mxu0 0
      %553 = vmatprep.subr.bf16.mxu0 0
      %554 = vmatpush1.bf16.msra.mxu0 0
      %555 = vmatprep.subr.bf16.mxu0 0
      %556 = vmatpush1.bf16.msra.mxu0 0
      %557 = vmatprep.subr.bf16.mxu0 0
      %558 = vmatpush1.bf16.msra.mxu0 0
      %559 = vmatprep.subr.bf16.mxu0 0
      %560 = vmatpush1.bf16.msra.mxu0 0
      %561 = vmatprep.subr.bf16.mxu0 0
      %562 = vmatpush1.bf16.msra.mxu0 0
      %563 = vmatprep.subr.bf16.mxu0 0
      %564 = vmatpush1.bf16.msra.mxu0 0
      %565 = vmatprep.subr.bf16.mxu0 0
      %566 = vmatpush1.bf16.msra.mxu0 0
      %567 = vmatprep.mubr.bf16.mxu0 0
      %568 = vmatmul.mubr.bf16.gmra.mrb[0].mxu0 %v530
      %v569 = vpop.f32.mrb[0].mxu0
      %v570 = vadd.f32 %v501, %v569
      %v571 = vpop.f32.mrb[0].mxu0
      %v572 = vadd.f32 %v501, %v571
      %v573 = vpop.f32.mrb[0].mxu0
      %v574 = vadd.f32 %v506, %v573
      %v575 = vpop.f32.mrb[0].mxu0
      %v576 = vadd.f32 %v506, %v575
      %577 = vmatprep.mubr.bf16.mxu0 0
      %578 = vmatmul.mubr.bf16.gmra.mrb[0].mxu0 %v533
      %v579 = vpop.f32.mrb[0].mxu0
      %v580 = vadd.f32 %v511, %v579
      %v581 = vpop.f32.mrb[0].mxu0
      %v582 = vadd.f32 %v511, %v581
      %v583 = vpop.f32.mrb[0].mxu0
      %v584 = vadd.f32 %v516, %v583
      %v585 = vpop.f32.mrb[0].mxu0
      %v586 = vadd.f32 %v516, %v585
      %587 = vdwg.mxu0
      %588 = vst [vmem:[%s251] sm:$0xff] %v570
      %589 = vst [vmem:[%s251 + $0x8] sm:$0xff] %v572
      %590 = vst [vmem:[%s251 + $0x10] sm:$0xff] %v574
      %591 = vst [vmem:[%s251 + $0x18] sm:$0xff] %v576
      %592 = vst [vmem:[%s251 + $0x20] sm:$0xff] %v580
      %593 = vst [vmem:[%s251 + $0x28] sm:$0xff] %v582
      %594 = vst [vmem:[%s251 + $0x30] sm:$0xff] %v584
      %595 = vst [vmem:[%s251 + $0x38] sm:$0xff] %v586
      %p596 = scmp.lt.s32.totalorder %s17, 1
      %s597 = scalar_select %p596, %s17, 1
      %s598 = smul.addr %s597, 8
      %s599 = smul.addr %s598, 8
      %s600 = scalar_lea.vmem %s6, %s599
      // Predicated region
      $region45: #{transposed_conv_forward.1} parent=43 // pred_check
        %p601 = pneg %p166
      $region46: #{transposed_conv_forward.1} parent=43 // pred_check_branch
        %603 = sbr.rel (%p601) target = $region48
      $region47: #{transposed_conv_forward.1} parent=43 // pred_region
        _
      $region48: #{transposed_conv_forward.1} parent=43 // pred_fallthru
        _
    $region44: #{transposed_conv_forward.1} parent=5 // pred_fallthru
      _
    %p604 = scmp.le.s32.totalorder 2, %s12
    // Predicated region
    $region49: #{transposed_conv_forward.1} parent=5 // pred_check
      %p605 = pneg %p604
    $region50: #{transposed_conv_forward.1} parent=5 // pred_check_branch
      %607 = sbr.rel (%p605) target = $region52
    $region51: #{transposed_conv_forward.1} parent=5 // pred_region
      %s608 = ssub.s32 %s12, 2
      // Predicated region
      $region53: #{transposed_conv_forward.1} parent=51 // pred_check
        %p609 = pneg %p172
      $region54: #{transposed_conv_forward.1} parent=51 // pred_check_branch
        %611 = sbr.rel (%p609) target = $region56
      $region55: #{transposed_conv_forward.1} parent=51 // pred_region
        %p612 = scmp.lt.s32.totalorder %s18, 1
        %s613 = scalar_select %p612, %s18, 1
        %s614 = smul.addr %s613, 8
        %s615 = smul.addr %s614, 8
        %s616 = scalar_lea.vmem %s6, %s615
      $region56: #{transposed_conv_forward.1} parent=51 // pred_fallthru
        _
    $region52: #{transposed_conv_forward.1} parent=5 // pred_fallthru
      _
  $region6: #{transposed_conv_forward.1} parent=0 // loop_footer
    %s16 = sadd.s32 1, %s12
  $region7: #{transposed_conv_forward.1} parent=0 // loop_footer_branch
    %11 = sbr.rel target = $region3
  $region8: #{transposed_conv_forward.1} parent=0 // loop_exit
    _

</llo_original>
